<compile_context>
chip_gen: v7x
topology: tpu7x:2x2x1
jax: 0.10.0
libtpu: 0.0.40
codegen_flags: <defaults>
</compile_context>

<pallas_src>
import functools

import jax
import jax.numpy as jnp
from jax.experimental import pallas as pl
from jax.experimental.pallas import tpu as pltpu

P_DROP = 0.5   # module's `p`
BETA = 0.9     # module's `beta` (only used by update_jacobian; unused in this forward)

# Single-buffer VMEM bytes per grid step we aim for (x2 for double buffering,
# must stay comfortably under 48 MiB scoped limit, incl. v7x's 64 MiB VMEM).
_TILE_BUDGET_BYTES = 12 * 1024 * 1024


def _jacobian_dropout_kernel(x_ref, j_ref, u_ref, o_ref, *, p):
    # x_ref: (B, C, T)  j_ref: (C, T)  u_ref: (C, T)  o_ref: (B, C, T)
    j = jnp.abs(j_ref[...].astype(jnp.float32))                # torch.abs(jacobian / randn)

    # Channel-wise min/max (torch dim=1), broadcast back over channels.
    jmin = jnp.min(j, axis=0, keepdims=True)                   # (1, T)
    jmax = jnp.max(j, axis=0, keepdims=True)                   # (1, T)
    denom = jmax - jmin
    # One reciprocal per lane column instead of C divides per column.
    # Guard denom == 0 (reference would produce NaN -> drop column); we keep it.
    inv = jnp.where(denom > 0.0, 1.0 / denom, 0.0)             # (1, T)
    j_norm = (j - jmin) * inv                                  # (C, T)

    # keep probability = 1 - clamp(p * j_norm, 0, 0.9999)
    keep_p = 1.0 - jnp.clip(p * j_norm, 0.0, 0.9999)           # (C, T)

    # Bernoulli(keep_p) via externally supplied uniforms; fused select (no
    # mask->float convert + extra multiply).
    mask = u_ref[...] < keep_p                                 # (C, T) bool
    o_ref[...] = jnp.where(mask[None, :, :], x_ref[...], jnp.zeros((), x_ref.dtype))


def _choose_tile_hw(hw, bytes_per_col):
    """Largest lane-dense (multiple-of-128) tile dividing hw under the budget."""
    if hw * bytes_per_col <= _TILE_BUDGET_BYTES:
        return hw
    if hw % 128 != 0:
        # TODO(synk): pad H*W up to a multiple of 128 for very large, non-aligned
        # feature maps; here we fall back to the full extent.
        return hw
    best = 128
    for t in range(128, hw + 1, 128):
        if hw % t == 0 and t * bytes_per_col <= _TILE_BUDGET_BYTES:
            best = t
    return best


def jacobian_dropout(x, j_raw, rng_key, *, p=P_DROP, training=True):
    """Forward of JacobianDropout (no stored running jacobian).

    x:       (B, C, H, W) float array
    j_raw:   (1, C, H, W) float array  == -2 * randn + 1 (abs is taken in-kernel)
    rng_key: jax PRNG key for the bernoulli mask
    """
    if not training:
        return x

    B, C, H, W = x.shape
    HW = H * W
    x3 = x.reshape(B, C, HW)
    j3 = j_raw.reshape(C, HW).astype(jnp.float32)
    # One uniform per (C, H, W) position, shared across the batch (torch idx
    # has shape (1, C, H, W)).
    u = jax.random.uniform(rng_key, (C, HW), dtype=jnp.float32)

    itemsize = jnp.dtype(x.dtype).itemsize
    # Per HW column resident in VMEM: x block + out block + j + u.
    bytes_per_col = 2 * B * C * itemsize + 2 * C * 4
    tile = _choose_tile_hw(HW, bytes_per_col)
    grid = (HW // tile,)

    out = pl.pallas_call(
        functools.partial(_jacobian_dropout_kernel, p=float(p)),
        out_shape=jax.ShapeDtypeStruct((B, C, HW), x.dtype),
        grid=grid,
        in_specs=[
            # Full batch + full channels per block; tile only the lane axis.
            pl.BlockSpec((B, C, tile), lambda i: (0, 0, i)),   # x
            pl.BlockSpec((C, tile), lambda i: (0, i)),         # j (full C required)
            pl.BlockSpec((C, tile), lambda i: (0, i)),         # uniforms
        ],
        out_specs=pl.BlockSpec((B, C, tile), lambda i: (0, 0, i)),
        compiler_params=pltpu.CompilerParams(
            dimension_semantics=("parallel",),        # megacore sharding on v7x
            vmem_limit_bytes=48 * 1024 * 1024,        # headroom for 64 MiB v7x VMEM
        ),
    )(x3, j3, u)

    return out.reshape(B, C, H, W)


if __name__ == "__main__":
    key = jax.random.PRNGKey(0)
    kx, kj, ku = jax.random.split(key, 3)

    B, C, H, W = 2, 4, 16, 16
    x = jax.random.normal(kx, (B, C, H, W), dtype=jnp.float32)

    # j = abs(-2 * randn(1, *x.shape[1:]) + 1); abs is applied inside the kernel.
    j_raw = -2.0 * jax.random.normal(kj, (1, C, H, W), dtype=jnp.float32) + 1.0

    out = jacobian_dropout(x, j_raw, ku, p=P_DROP, training=True)
    out = jax.block_until_ready(out)

    assert out.shape == x.shape and out.dtype == x.dtype
    # Sanity: every output element is either 0 (dropped) or equal to x (kept).
    kept_or_zero = jnp.logical_or(out == 0.0, out == x)
    assert bool(jnp.all(kept_or_zero))

    # Pure-JAX reference using the identical uniform draw / op ordering.
    u_ref = jax.random.uniform(ku, (C, H * W), dtype=jnp.float32)
    j = jnp.abs(j_raw.reshape(C, H * W))
    jmin = j.min(axis=0, keepdims=True)
    jmax = j.max(axis=0, keepdims=True)
    denom = jmax - jmin
    inv = jnp.where(denom > 0.0, 1.0 / denom, 0.0)
    keep_p = 1.0 - jnp.clip(P_DROP * (j - jmin) * inv, 0.0, 0.9999)
    mask = (u_ref < keep_p).reshape(1, C, H, W)
    ref = jnp.where(mask, x, 0.0).astype(x.dtype)
    assert bool(jnp.allclose(out, ref))

    print("KERNEL_OK")
</pallas_src>

<mosaic_0001>
module attributes {stable_mosaic.version = 11 : i64} {
  func.func @_jacobian_dropout_kernel(%arg0: i32, %arg1: memref<2x4x256xf32, #tpu.memory_space<vmem>>, %arg2: memref<4x256xf32, #tpu.memory_space<vmem>>, %arg3: memref<4x256xf32, #tpu.memory_space<vmem>>, %arg4: memref<2x4x256xf32, #tpu.memory_space<vmem>>) attributes {dimension_semantics = [#tpu.dimension_semantics<parallel>], iteration_bounds = array<i64: 1>, scalar_prefetch = 0 : i64, scratch_operands = 0 : i64, tpu.core_type = #tpu.core_type<tc>, window_params = [{transform_indices = @transform_0, window_bounds = array<i64: 2, 4, 256>}, {transform_indices = @transform_1, window_bounds = array<i64: 4, 256>}, {transform_indices = @transform_2, window_bounds = array<i64: 4, 256>}, {transform_indices = @transform_3, window_bounds = array<i64: 2, 4, 256>}]} {
    %c0 = arith.constant 0 : index
    %c0_0 = arith.constant 0 : index
    %0 = vector.load %arg2[%c0, %c0_0] : memref<4x256xf32, #tpu.memory_space<vmem>>, vector<4x256xf32>
    %1 = math.absf %0 : vector<4x256xf32>
    %cst = arith.constant dense<0x7F800000> : vector<256xf32>
    %2 = vector.multi_reduction <minimumf>, %1, %cst [0] : vector<4x256xf32> to vector<256xf32>
    %3 = vector.shape_cast %2 : vector<256xf32> to vector<1x256xf32>
    %cst_1 = arith.constant dense<0xFF800000> : vector<256xf32>
    %4 = vector.multi_reduction <maximumf>, %1, %cst_1 [0] : vector<4x256xf32> to vector<256xf32>
    %5 = vector.shape_cast %4 : vector<256xf32> to vector<1x256xf32>
    %6 = arith.subf %5, %3 : vector<1x256xf32>
    %cst_2 = arith.constant 0.000000e+00 : f32
    %7 = vector.broadcast %cst_2 : f32 to vector<1x256xf32>
    %8 = arith.cmpf ogt, %6, %7 : vector<1x256xf32>
    %cst_3 = arith.constant 1.000000e+00 : f32
    %9 = vector.broadcast %cst_3 : f32 to vector<1x256xf32>
    %10 = arith.divf %9, %6 : vector<1x256xf32>
    %cst_4 = arith.constant 0.000000e+00 : f32
    %11 = vector.broadcast %cst_4 : f32 to vector<1x256xf32>
    %12 = arith.select %8, %10, %11 : vector<1x256xi1>, vector<1x256xf32>
    %13 = vector.broadcast %3 : vector<1x256xf32> to vector<4x256xf32>
    %14 = arith.subf %1, %13 : vector<4x256xf32>
    %15 = vector.broadcast %12 : vector<1x256xf32> to vector<4x256xf32>
    %16 = arith.mulf %14, %15 : vector<4x256xf32>
    %cst_5 = arith.constant 5.000000e-01 : f32
    %17 = vector.broadcast %cst_5 : f32 to vector<4x256xf32>
    %18 = arith.mulf %17, %16 : vector<4x256xf32>
    %cst_6 = arith.constant 0.000000e+00 : f32
    %cst_7 = arith.constant 0.999899983 : f32
    %19 = vector.broadcast %cst_6 : f32 to vector<4x256xf32>
    %20 = arith.maximumf %19, %18 : vector<4x256xf32>
    %21 = vector.broadcast %cst_7 : f32 to vector<4x256xf32>
    %22 = arith.minimumf %21, %20 : vector<4x256xf32>
    %cst_8 = arith.constant 1.000000e+00 : f32
    %23 = vector.broadcast %cst_8 : f32 to vector<4x256xf32>
    %24 = arith.subf %23, %22 : vector<4x256xf32>
    %c0_9 = arith.constant 0 : index
    %c0_10 = arith.constant 0 : index
    %25 = vector.load %arg3[%c0_9, %c0_10] : memref<4x256xf32, #tpu.memory_space<vmem>>, vector<4x256xf32>
    %26 = arith.cmpf olt, %25, %24 : vector<4x256xf32>
    %27 = vector.shape_cast %26 : vector<4x256xi1> to vector<1x4x256xi1>
    %c0_11 = arith.constant 0 : index
    %c0_12 = arith.constant 0 : index
    %c0_13 = arith.constant 0 : index
    %28 = vector.load %arg1[%c0_11, %c0_12, %c0_13] : memref<2x4x256xf32, #tpu.memory_space<vmem>>, vector<2x4x256xf32>
    %cst_14 = arith.constant 0.000000e+00 : f32
    %29 = vector.shape_cast %27 : vector<1x4x256xi1> to vector<1x4x256xi1>
    %30 = vector.broadcast %29 : vector<1x4x256xi1> to vector<2x4x256xi1>
    %31 = vector.broadcast %cst_14 : f32 to vector<2x4x256xf32>
    %32 = arith.select %30, %28, %31 : vector<2x4x256xi1>, vector<2x4x256xf32>
    %c0_15 = arith.constant 0 : index
    %c0_16 = arith.constant 0 : index
    %c0_17 = arith.constant 0 : index
    %33 = vector.load %arg4[%c0_15, %c0_16, %c0_17] : memref<2x4x256xf32, #tpu.memory_space<vmem>>, vector<2x4x256xf32>
    tpu.vector_store %arg4[%c0_15, %c0_16, %c0_17], %32 {strides = array<i32>} : memref<2x4x256xf32, #tpu.memory_space<vmem>>, vector<2x4x256xf32>,
    return
  }
  func.func @transform_0(%arg0: i32) -> (i32, i32, i32) {
    %c0_i32 = arith.constant 0 : i32
    %c0_i32_0 = arith.constant 0 : i32
    %c0_i32_1 = arith.constant 0 : i32
    return %c0_i32, %c0_i32_0, %arg0 : i32, i32, i32
  }
  func.func @transform_1(%arg0: i32) -> (i32, i32) {
    %c0_i32 = arith.constant 0 : i32
    %c0_i32_0 = arith.constant 0 : i32
    return %c0_i32, %arg0 : i32, i32
  }
  func.func @transform_2(%arg0: i32) -> (i32, i32) {
    %c0_i32 = arith.constant 0 : i32
    %c0_i32_0 = arith.constant 0 : i32
    return %c0_i32, %arg0 : i32, i32
  }
  func.func @transform_3(%arg0: i32) -> (i32, i32, i32) {
    %c0_i32 = arith.constant 0 : i32
    %c0_i32_0 = arith.constant 0 : i32
    %c0_i32_1 = arith.constant 0 : i32
    return %c0_i32, %c0_i32_0, %arg0 : i32, i32, i32
  }
}

</mosaic_0001>

<llo_original>
// kernel: tpu_custom_call.1
$region0: #{tpu_custom_call.1}
  #allocation0 [shape = 'u32[]', space=smem, size = 0x4, offset = 0x4, fixed_abs, tag = 'smem constant byte address 0x4 - core index']
  #allocation1 [shape = 'u32[144,128]{1,0:T(1,128)}', space=vmem, size = 0x12000, scoped, tag = 'internal scratch']
  %s0 = inlined_call_operand.hbm [shape: f32[2,4,256], index: 0, kind: input, shape index: {}]
  %s1 = inlined_call_operand.hbm [shape: f32[4,256], index: 1, kind: input, shape index: {}]
  %s2 = inlined_call_operand.hbm [shape: f32[4,256], index: 2, kind: input, shape index: {}]
  %s3 = inlined_call_operand.hbm [shape: f32[2,4,256], index: 3, kind: output, shape index: {}]
  %s4 = sld [smem:[#allocation0]]
  $region34: #{tpu_custom_call.1} parent=0
    _
  %s6 = ssub.s32 1, %s4
  %s7 = scalar_select 0, %s6, %s4
  $region1: #{tpu_custom_call.1} parent=0
    #allocation2 [shape = 'u8[8192]{0}', space=vmem, size = 0x2000, scoped, tag = 'input window, operand 0, single buffered']
    #allocation3 [shape = 's32[1]{0}', space=sflag, size = 0x4, scoped, tag = 'scoped memory for tpu_custom_call.1']
    #allocation4 [shape = 's32[1]{0}', space=sflag, size = 0x4, scoped, tag = 'scoped memory for tpu_custom_call.1']
    #allocation5 [shape = 'u8[4096]{0}', space=vmem, size = 0x1000, scoped, tag = 'input window, operand 1, single buffered']
    #allocation6 [shape = 's32[1]{0}', space=sflag, size = 0x4, scoped, tag = 'scoped memory for tpu_custom_call.1']
    #allocation7 [shape = 'u8[4096]{0}', space=vmem, size = 0x1000, scoped, tag = 'input window, operand 2, single buffered']
    #allocation8 [shape = 'u8[8192]{0}', space=vmem, size = 0x2000, scoped, tag = 'output window, operand 0, single buffered']
    %8 = vsyncpa [#allocation3], 0
    %9 = vsyncpa [#allocation6], 0
    %10 = vsyncpa [#allocation4], 0
    // Predicated region
    $region2: #{tpu_custom_call.1} parent=1 // pred_check
      _
    $region3: #{tpu_custom_call.1} parent=1 // pred_check_branch
      %12 = sbr.rel (0) target = $region5
    $region4: #{tpu_custom_call.1} parent=1 // pred_region
      %s14 = ssub.s32 256, 256
      %15 = vsyncadd [#allocation3], %s14
      %s16 = sshll.u32 [#allocation2], 4
      %s17 = int_to_ptr.vmem [resolvable:$true] %s16
      %22 = dma.hbm_to_vmem [thread:$0]  %s0, 256, %s17, [#allocation3], 128, 128, 8
    $region5: #{tpu_custom_call.1} parent=1 // pred_fallthru
      _
    // Predicated region
    $region6: #{tpu_custom_call.1} parent=1 // pred_check
      _
    $region7: #{tpu_custom_call.1} parent=1 // pred_check_branch
      %24 = sbr.rel (0) target = $region9
    $region8: #{tpu_custom_call.1} parent=1 // pred_region
      %s26 = ssub.s32 128, 128
      %27 = vsyncadd [#allocation6], %s26
      %s29 = sshll.u32 [#allocation5], 4
      %s30 = int_to_ptr.vmem [resolvable:$true] %s29
      %32 = dma.hbm_to_vmem [thread:$0]  %s1, 128, %s30, [#allocation6]
    $region9: #{tpu_custom_call.1} parent=1 // pred_fallthru
      _
    // Predicated region
    $region10: #{tpu_custom_call.1} parent=1 // pred_check
      _
    $region11: #{tpu_custom_call.1} parent=1 // pred_check_branch
      %34 = sbr.rel (0) target = $region13
    $region12: #{tpu_custom_call.1} parent=1 // pred_region
      %s36 = ssub.s32 128, 128
      %37 = vsyncadd [#allocation6], %s36
      %s39 = sshll.u32 [#allocation7], 4
      %s40 = int_to_ptr.vmem [resolvable:$true] %s39
      %42 = dma.hbm_to_vmem [thread:$0]  %s2, 128, %s40, [#allocation6]
    $region13: #{tpu_custom_call.1} parent=1 // pred_fallthru
      _
    // Predicated region
    $region14: #{tpu_custom_call.1} parent=1 // pred_check
      _
    $region15: #{tpu_custom_call.1} parent=1 // pred_check_branch
      %44 = sbr.rel (0) target = $region17
    $region16: #{tpu_custom_call.1} parent=1 // pred_region
      %45 = dma.done [#allocation3], 256
    $region17: #{tpu_custom_call.1} parent=1 // pred_fallthru
      _
    // Predicated region
    $region18: #{tpu_custom_call.1} parent=1 // pred_check
      _
    $region19: #{tpu_custom_call.1} parent=1 // pred_check_branch
      %47 = sbr.rel (0) target = $region21
    $region20: #{tpu_custom_call.1} parent=1 // pred_region
      %48 = dma.done [#allocation6], 128
    $region21: #{tpu_custom_call.1} parent=1 // pred_fallthru
      _
    // Predicated region
    $region22: #{tpu_custom_call.1} parent=1 // pred_check
      _
    $region23: #{tpu_custom_call.1} parent=1 // pred_check_branch
      %50 = sbr.rel (0) target = $region25
    $region24: #{tpu_custom_call.1} parent=1 // pred_region
      %51 = dma.done [#allocation6], 128
    $region25: #{tpu_custom_call.1} parent=1 // pred_fallthru
      _
    %v52 = vld [vmem:[#allocation5] sm:$0xff]
    %v53 = vand.u32 2147483647, %v52
    %v55 = vcombine.high %v53, %v53
    %vm57 = vcmask 1043456
    %v58 = vsel %vm57, %v53, inf
    %v59 = vrot.slane %v58, 4
    %v60 = vmin.f32 %v58, %v59
    %v61 = vrot.slane %v60, 2
    %v62 = vmin.f32 %v60, %v61
    %v63 = vrot.slane %v62, 1
    %v64 = vmin.f32 %v62, %v63
    %v65 = vsel %vm57, %v55, inf
    %v66 = vrot.slane %v65, 4
    %v67 = vmin.f32 %v65, %v66
    %v68 = vrot.slane %v67, 2
    %v69 = vmin.f32 %v67, %v68
    %v70 = vrot.slane %v69, 1
    %v71 = vmin.f32 %v69, %v70
    %v72 = vsel %vm57, %v53, -inf
    %v73 = vrot.slane %v72, 4
    %v74 = vmax.f32 %v72, %v73
    %v75 = vrot.slane %v74, 2
    %v76 = vmax.f32 %v74, %v75
    %v77 = vrot.slane %v76, 1
    %v78 = vmax.f32 %v76, %v77
    %v79 = vsel %vm57, %v55, -inf
    %v80 = vrot.slane %v79, 4
    %v81 = vmax.f32 %v79, %v80
    %v82 = vrot.slane %v81, 2
    %v83 = vmax.f32 %v81, %v82
    %v84 = vrot.slane %v83, 1
    %v85 = vmax.f32 %v83, %v84
    %v86 = vsub.f32 %v78, %v64
    %v87 = vsub.f32 %v85, %v71
    %vm88 = vcmp.gt.f32.partialorder %v86, 0.0
    %vm89 = vcmp.gt.f32.partialorder %v87, 0.0
    %v90 = vrcp.pop %v86
    %v91 = vmul.f32 1.0, %v90
    %v92 = vrcp.pop %v87
    %v93 = vmul.f32 1.0, %v92
    %v94 = vsel %vm88, %v91, 0.0
    %v95 = vsel %vm89, %v93, 0.0
    %v98 = vcombine.low %v64, %v71
    %v100 = vsub.f32 %v53, %v98
    %v103 = vcombine.low %v94, %v95
    %v105 = vmul.f32 %v100, %v103
    %v106 = vmul.f32 %v105, 0.5
    %v107 = vmax.f32 %v106, 0.0
    %v108 = vmin.f32 %v107, 0.9999
    %v109 = vsub.f32 1.0, %v108
    %v110 = vld [vmem:[#allocation7] sm:$0xff]
    %vm111 = vcmp.lt.f32.partialorder %v110, %v109
    %v112 = vld [vmem:[#allocation2] sm:$0xff]
    %v113 = vld [vmem:[#allocation2 + $0x8] sm:$0xff]
    %v114 = vsel %vm111, 1, 0
    %vm115 = vcmp.eq.s32.totalorder %v114, 1
    %v116 = vsel %vm115, %v112, 0.0
    %v117 = vsel %vm115, %v113, 0.0
    %118 = vst [vmem:[#allocation8] sm:$0xff] %v116
    %119 = vst [vmem:[#allocation8 + $0x8] sm:$0xff] %v117
    // Predicated region
    $region26: #{tpu_custom_call.1} parent=1 // pred_check
      _
    $region27: #{tpu_custom_call.1} parent=1 // pred_check_branch
      %121 = sbr.rel (0) target = $region29
    $region28: #{tpu_custom_call.1} parent=1 // pred_region
      %s123 = ssub.s32 256, 256
      %124 = vsyncadd [#allocation4], %s123
      %s125 = sshll.u32 [#allocation8], 4
      %s126 = int_to_ptr.vmem [resolvable:$true] %s125
      %131 = dma.vmem_to_hbm [thread:$0]  %s126, 256, %s3, [#allocation4], 128, 128, 8
    $region29: #{tpu_custom_call.1} parent=1 // pred_fallthru
      _
    // Predicated region
    $region30: #{tpu_custom_call.1} parent=1 // pred_check
      _
    $region31: #{tpu_custom_call.1} parent=1 // pred_check_branch
      %133 = sbr.rel (0) target = $region33
    $region32: #{tpu_custom_call.1} parent=1 // pred_region
      %134 = dma.done [#allocation4], 256
    $region33: #{tpu_custom_call.1} parent=1 // pred_fallthru
      _
    %135 = vsyncpa [#allocation3], 1
    %136 = vsyncpa [#allocation6], 1
    %137 = vsyncpa [#allocation4], 1

</llo_original>
